<compile_context>
chip_gen: v7x
topology: tpu7x:2x2x1
jax: 0.10.0
libtpu: 0.0.40
codegen_flags: <defaults>
</compile_context>

<pallas_src>
import jax
import jax.numpy as jnp
from jax.experimental import pallas as pl
from jax.experimental.pallas import tpu as pltpu

MAX_PRIME_NUMBER = 128   # input feature width of lin1
HID = 128                # lane-aligned padded hidden width

# (in, out) sizes of the 6 linear layers (PyTorch module spec).
LAYER_DIMS = [
    (MAX_PRIME_NUMBER, 100),
    (100, 100),
    (100, 50),
    (50, 10),
    (10, 1),
    (1, 1),
]


def _round_up(n, m):
    return ((n + m - 1) // m) * m


def _pad2(a, rows, cols):
    return jnp.pad(a, ((0, rows - a.shape[0]), (0, cols - a.shape[1])))


# --------------------------------------------------------------------------
# Kernel
# --------------------------------------------------------------------------
def _mlp_kernel(x_ref,
                w1, b1, w2, b2, w3, b3, w4, b4, w5, tail,
                o_ref):
    """Forward pass of PrimeNumberModel for one batch tile [tb, 128]."""

    def dense_relu(h_bf16, w_ref, b_ref):
        # MXU matmul on bf16 operands, f32 accumulate; bias/ReLU in f32.
        acc = jnp.dot(h_bf16, w_ref[...], preferred_element_type=jnp.float32)
        return jnp.maximum(acc + b_ref[...], 0.0)

    h = dense_relu(x_ref[...], w1, b1)                      # lin1 + relu
    h = dense_relu(h.astype(jnp.bfloat16), w2, b2)          # lin2 + relu
    h = dense_relu(h.astype(jnp.bfloat16), w3, b3)          # lin3 + relu
    h = dense_relu(h.astype(jnp.bfloat16), w4, b4)          # lin4 + relu

    # lin5 (10 -> 1, stored padded to 128 -> 1): multiply + lane-reduce keeps
    # the 1-lane column off the MXU.  tail = [b5, w6, b6] (SMEM scalars).
    z5 = jnp.sum(h * w5[...], axis=-1, keepdims=True) + tail[0]
    h5 = jnp.maximum(z5, 0.0)                               # lin5 + relu

    # lin6 (1 -> 1): scalar affine on the VPU.
    z6 = h5 * tail[1] + tail[2]

    # sigmoid: exp + approx reciprocal both land on the EUP slot.
    o_ref[...] = pl.reciprocal(1.0 + jnp.exp(-z6), approx=True)


# --------------------------------------------------------------------------
# Parameter handling
# --------------------------------------------------------------------------
def init_params(key):
    """PyTorch-layout params: list of (W [out, in] f32, b [out] f32) with
    uniform(-1/sqrt(fan_in), 1/sqrt(fan_in)) init (as nn.Linear does)."""
    params = []
    for (fan_in, fan_out) in LAYER_DIMS:
        key, kw, kb = jax.random.split(key, 3)
        bound = 1.0 / (fan_in ** 0.5)
        w = jax.random.uniform(kw, (fan_out, fan_in), jnp.float32, -bound, bound)
        b = jax.random.uniform(kb, (fan_out,), jnp.float32, -bound, bound)
        params.append((w, b))
    return params


def pack_params(params):
    """torch-layout params -> stored kernel format (do this once, offline).

    Layers 1-4: W as [in_pad=128, out_pad=128] bf16 (transposed, zero padded),
    b as [1, 128] f32 (zero padded).  Layer 5: a [1, 128] f32 row.  Layer-5
    bias and layer-6 weight/bias are packed into a 3-element f32 SMEM array.
    Zero padding is exact: padded lanes stay 0 through ReLU.
    """
    packed = []
    for (w, b) in params[:4]:
        wt = _pad2(w.T.astype(jnp.float32), HID, HID).astype(jnp.bfloat16)
        bp = _pad2(b.astype(jnp.float32)[None, :], 1, HID)
        packed += [wt, bp]
    w5, b5 = params[4]
    w6, b6 = params[5]
    w5row = _pad2(w5.astype(jnp.float32), 1, HID)                 # [1, 128]
    tail = jnp.array([b5[0], w6[0, 0], b6[0]], jnp.float32)       # [b5, w6, b6]
    return (*packed, w5row, tail)


# --------------------------------------------------------------------------
# Wrapper
# --------------------------------------------------------------------------
def prime_number_model(x, packed, *, tb=512):
    """x: [B, 128] float (f32 or bf16) -> [B, 1] float32."""
    B, F = x.shape
    assert F == MAX_PRIME_NUMBER

    # Fixed batch tile (multiple of 8) so the BlockSpec pipeline overlaps the
    # x-tile DMA of step i+1 with compute of step i; clamp for tiny batches.
    tb = min(tb, _round_up(max(B, 8), 8))
    Bp = _round_up(B, tb)

    # bf16 halves the only large HBM stream; callers that already keep x in
    # bf16 pay nothing here.  Padded tail rows are zeros (masked off below).
    xp = jnp.pad(x, ((0, Bp - B), (0, 0))).astype(jnp.bfloat16)

    w1, b1, w2, b2, w3, b3, w4, b4, w5, tail = packed

    def _tile(i):   # batch-tiled blocks (x, out)
        return (i, 0)

    def _rep(i):    # weights/biases: same full-array block every step
        return (0, 0)

    in_specs = [pl.BlockSpec((tb, F), _tile)]
    for arr in (w1, b1, w2, b2, w3, b3, w4, b4, w5):
        in_specs.append(pl.BlockSpec(arr.shape, _rep))
    in_specs.append(pl.BlockSpec(memory_space=pltpu.MemorySpace.SMEM))  # tail

    # Advisory cost so XLA schedules neighbours around the kernel sensibly.
    flops_per_row = 2 * (128 * 100 + 100 * 100 + 100 * 50 + 50 * 10 + 10 + 1)
    wbytes = sum(int(a.size) * a.dtype.itemsize for a in packed)
    cost = pl.CostEstimate(
        flops=flops_per_row * Bp,
        transcendentals=2 * Bp,                      # exp + reciprocal per row
        bytes_accessed=Bp * (F * 2 + 4) + wbytes,    # bf16 x in, f32 out
    )

    out = pl.pallas_call(
        _mlp_kernel,
        out_shape=jax.ShapeDtypeStruct((Bp, 1), jnp.float32),
        grid_spec=pltpu.PrefetchScalarGridSpec(
            num_scalar_prefetch=0,
            grid=(Bp // tb,),
            in_specs=in_specs,
            out_specs=pl.BlockSpec((tb, 1), _tile),
        ),
        compiler_params=pltpu.CompilerParams(
            dimension_semantics=("parallel",)),       # megacore on v7x
        cost_estimate=cost,
    )(xp, w1, b1, w2, b2, w3, b3, w4, b4, w5, tail)

    return out[:B]


# --------------------------------------------------------------------------
# Pure-JAX reference (matches kernel numerics: bf16 dot operands, f32 rest)
# --------------------------------------------------------------------------
def _reference(x, params):
    h = x
    for i, (w, b) in enumerate(params):
        if i < 4:
            h = jnp.dot(h.astype(jnp.bfloat16), w.T.astype(jnp.bfloat16),
                        preferred_element_type=jnp.float32) + b[None, :]
            h = jnp.maximum(h, 0.0)
        elif i == 4:
            h = jnp.dot(h, w.T, preferred_element_type=jnp.float32) + b[None, :]
            h = jnp.maximum(h, 0.0)
        else:
            h = h * w[0, 0] + b[0]
    return 1.0 / (1.0 + jnp.exp(-h))


if __name__ == "__main__":
    key = jax.random.PRNGKey(0)
    k_params, k_x1, k_x2 = jax.random.split(key, 3)

    params = init_params(k_params)
    packed = pack_params(params)

    # Small shape (single-tile path).
    x_small = jax.random.normal(k_x1, (8, MAX_PRIME_NUMBER), jnp.float32)
    out_small = jax.block_until_ready(prime_number_model(x_small, packed))
    ref_small = _reference(x_small, params)
    assert out_small.shape == (8, 1)
    assert jnp.allclose(out_small, ref_small, atol=2e-3, rtol=2e-3), (
        float(jnp.max(jnp.abs(out_small - ref_small))))

    # Larger, non-multiple batch: exercises the multi-step pipelined grid
    # (tb=512, padded batch 1024 -> 2 parallel steps) and the tail masking.
    x_big = jax.random.normal(k_x2, (1000, MAX_PRIME_NUMBER), jnp.float32)
    out_big = jax.block_until_ready(prime_number_model(x_big, packed))
    ref_big = _reference(x_big, params)
    assert out_big.shape == (1000, 1)
    assert jnp.allclose(out_big, ref_big, atol=2e-3, rtol=2e-3), (
        float(jnp.max(jnp.abs(out_big - ref_big))))

    print("KERNEL_OK")
</pallas_src>

<mosaic_0001>
module attributes {stable_mosaic.version = 11 : i64} {
  func.func @_mlp_kernel(%arg0: i32, %arg1: memref<8x128xbf16, #tpu.memory_space<vmem>>, %arg2: memref<128x128xbf16, #tpu.memory_space<vmem>>, %arg3: memref<1x128xf32, #tpu.memory_space<vmem>>, %arg4: memref<128x128xbf16, #tpu.memory_space<vmem>>, %arg5: memref<1x128xf32, #tpu.memory_space<vmem>>, %arg6: memref<128x128xbf16, #tpu.memory_space<vmem>>, %arg7: memref<1x128xf32, #tpu.memory_space<vmem>>, %arg8: memref<128x128xbf16, #tpu.memory_space<vmem>>, %arg9: memref<1x128xf32, #tpu.memory_space<vmem>>, %arg10: memref<1x128xf32, #tpu.memory_space<vmem>>, %arg11: memref<3xf32, #tpu.memory_space<smem>>, %arg12: memref<8x1xf32, #tpu.memory_space<vmem>>) attributes {dimension_semantics = [#tpu.dimension_semantics<parallel>], iteration_bounds = array<i64: 1>, scalar_prefetch = 0 : i64, scratch_operands = 0 : i64, tpu.core_type = #tpu.core_type<tc>, window_params = [{transform_indices = @transform_0, window_bounds = array<i64: 8, 128>}, {pipeline_mode = #tpu.pipeline_mode<synchronous>, transform_indices = @transform_1, window_bounds = array<i64: 128, 128>}, {pipeline_mode = #tpu.pipeline_mode<synchronous>, transform_indices = @transform_2, window_bounds = array<i64: 1, 128>}, {pipeline_mode = #tpu.pipeline_mode<synchronous>, transform_indices = @transform_3, window_bounds = array<i64: 128, 128>}, {pipeline_mode = #tpu.pipeline_mode<synchronous>, transform_indices = @transform_4, window_bounds = array<i64: 1, 128>}, {pipeline_mode = #tpu.pipeline_mode<synchronous>, transform_indices = @transform_5, window_bounds = array<i64: 128, 128>}, {pipeline_mode = #tpu.pipeline_mode<synchronous>, transform_indices = @transform_6, window_bounds = array<i64: 1, 128>}, {pipeline_mode = #tpu.pipeline_mode<synchronous>, transform_indices = @transform_7, window_bounds = array<i64: 128, 128>}, {pipeline_mode = #tpu.pipeline_mode<synchronous>, transform_indices = @transform_8, window_bounds = array<i64: 1, 128>}, {pipeline_mode = #tpu.pipeline_mode<synchronous>, transform_indices = @transform_9, window_bounds = array<i64: 1, 128>}, {transform_indices = @transform_10, window_bounds = array<i64: 3>}, {transform_indices = @transform_11, window_bounds = array<i64: 8, 1>}]} {
    %c0 = arith.constant 0 : index
    %c0_0 = arith.constant 0 : index
    %0 = vector.load %arg1[%c0, %c0_0] : memref<8x128xbf16, #tpu.memory_space<vmem>>, vector<8x128xbf16>
    %c0_1 = arith.constant 0 : index
    %c0_2 = arith.constant 0 : index
    %1 = vector.load %arg2[%c0_1, %c0_2] : memref<128x128xbf16, #tpu.memory_space<vmem>>, vector<128x128xbf16>
    %cst = arith.constant dense<0.000000e+00> : vector<8x128xf32>
    %2 = tpu.matmul %0, %1, %cst {dimension_numbers = #tpu.dot_dimension_numbers<[1], [0], [0], [1], [0, 0, 1, 1], [], []>} : vector<8x128xbf16>, vector<128x128xbf16>, vector<8x128xf32> -> vector<8x128xf32>
    %c0_3 = arith.constant 0 : index
    %c0_4 = arith.constant 0 : index
    %3 = vector.load %arg3[%c0_3, %c0_4] : memref<1x128xf32, #tpu.memory_space<vmem>>, vector<1x128xf32>
    %4 = vector.broadcast %3 : vector<1x128xf32> to vector<8x128xf32>
    %5 = arith.addf %2, %4 : vector<8x128xf32>
    %cst_5 = arith.constant 0.000000e+00 : f32
    %6 = vector.broadcast %cst_5 : f32 to vector<8x128xf32>
    %7 = arith.maximumf %5, %6 : vector<8x128xf32>
    %8 = arith.truncf %7 : vector<8x128xf32> to vector<8x128xbf16>
    %c0_6 = arith.constant 0 : index
    %c0_7 = arith.constant 0 : index
    %9 = vector.load %arg4[%c0_6, %c0_7] : memref<128x128xbf16, #tpu.memory_space<vmem>>, vector<128x128xbf16>
    %cst_8 = arith.constant dense<0.000000e+00> : vector<8x128xf32>
    %10 = tpu.matmul %8, %9, %cst_8 {dimension_numbers = #tpu.dot_dimension_numbers<[1], [0], [0], [1], [0, 0, 1, 1], [], []>} : vector<8x128xbf16>, vector<128x128xbf16>, vector<8x128xf32> -> vector<8x128xf32>
    %c0_9 = arith.constant 0 : index
    %c0_10 = arith.constant 0 : index
    %11 = vector.load %arg5[%c0_9, %c0_10] : memref<1x128xf32, #tpu.memory_space<vmem>>, vector<1x128xf32>
    %12 = vector.broadcast %11 : vector<1x128xf32> to vector<8x128xf32>
    %13 = arith.addf %10, %12 : vector<8x128xf32>
    %cst_11 = arith.constant 0.000000e+00 : f32
    %14 = vector.broadcast %cst_11 : f32 to vector<8x128xf32>
    %15 = arith.maximumf %13, %14 : vector<8x128xf32>
    %16 = arith.truncf %15 : vector<8x128xf32> to vector<8x128xbf16>
    %c0_12 = arith.constant 0 : index
    %c0_13 = arith.constant 0 : index
    %17 = vector.load %arg6[%c0_12, %c0_13] : memref<128x128xbf16, #tpu.memory_space<vmem>>, vector<128x128xbf16>
    %cst_14 = arith.constant dense<0.000000e+00> : vector<8x128xf32>
    %18 = tpu.matmul %16, %17, %cst_14 {dimension_numbers = #tpu.dot_dimension_numbers<[1], [0], [0], [1], [0, 0, 1, 1], [], []>} : vector<8x128xbf16>, vector<128x128xbf16>, vector<8x128xf32> -> vector<8x128xf32>
    %c0_15 = arith.constant 0 : index
    %c0_16 = arith.constant 0 : index
    %19 = vector.load %arg7[%c0_15, %c0_16] : memref<1x128xf32, #tpu.memory_space<vmem>>, vector<1x128xf32>
    %20 = vector.broadcast %19 : vector<1x128xf32> to vector<8x128xf32>
    %21 = arith.addf %18, %20 : vector<8x128xf32>
    %cst_17 = arith.constant 0.000000e+00 : f32
    %22 = vector.broadcast %cst_17 : f32 to vector<8x128xf32>
    %23 = arith.maximumf %21, %22 : vector<8x128xf32>
    %24 = arith.truncf %23 : vector<8x128xf32> to vector<8x128xbf16>
    %c0_18 = arith.constant 0 : index
    %c0_19 = arith.constant 0 : index
    %25 = vector.load %arg8[%c0_18, %c0_19] : memref<128x128xbf16, #tpu.memory_space<vmem>>, vector<128x128xbf16>
    %cst_20 = arith.constant dense<0.000000e+00> : vector<8x128xf32>
    %26 = tpu.matmul %24, %25, %cst_20 {dimension_numbers = #tpu.dot_dimension_numbers<[1], [0], [0], [1], [0, 0, 1, 1], [], []>} : vector<8x128xbf16>, vector<128x128xbf16>, vector<8x128xf32> -> vector<8x128xf32>
    %c0_21 = arith.constant 0 : index
    %c0_22 = arith.constant 0 : index
    %27 = vector.load %arg9[%c0_21, %c0_22] : memref<1x128xf32, #tpu.memory_space<vmem>>, vector<1x128xf32>
    %28 = vector.broadcast %27 : vector<1x128xf32> to vector<8x128xf32>
    %29 = arith.addf %26, %28 : vector<8x128xf32>
    %cst_23 = arith.constant 0.000000e+00 : f32
    %30 = vector.broadcast %cst_23 : f32 to vector<8x128xf32>
    %31 = arith.maximumf %29, %30 : vector<8x128xf32>
    %c0_24 = arith.constant 0 : index
    %c0_25 = arith.constant 0 : index
    %32 = vector.load %arg10[%c0_24, %c0_25] : memref<1x128xf32, #tpu.memory_space<vmem>>, vector<1x128xf32>
    %33 = vector.broadcast %32 : vector<1x128xf32> to vector<8x128xf32>
    %34 = arith.mulf %31, %33 : vector<8x128xf32>
    %cst_26 = arith.constant dense<0.000000e+00> : vector<8xf32>
    %35 = vector.multi_reduction <add>, %34, %cst_26 [1] : vector<8x128xf32> to vector<8xf32>
    %36 = vector.shape_cast %35 : vector<8xf32> to vector<8x1xf32>
    %c0_27 = arith.constant 0 : index
    %37 = memref.load %arg11[%c0_27] : memref<3xf32, #tpu.memory_space<smem>>
    %38 = vector.broadcast %37 : f32 to vector<8x1xf32>
    %39 = arith.addf %36, %38 : vector<8x1xf32>
    %cst_28 = arith.constant 0.000000e+00 : f32
    %40 = vector.broadcast %cst_28 : f32 to vector<8x1xf32>
    %41 = arith.maximumf %39, %40 : vector<8x1xf32>
    %c1 = arith.constant 1 : index
    %42 = memref.load %arg11[%c1] : memref<3xf32, #tpu.memory_space<smem>>
    %43 = vector.broadcast %42 : f32 to vector<8x1xf32>
    %44 = arith.mulf %41, %43 : vector<8x1xf32>
    %c2 = arith.constant 2 : index
    %45 = memref.load %arg11[%c2] : memref<3xf32, #tpu.memory_space<smem>>
    %46 = vector.broadcast %45 : f32 to vector<8x1xf32>
    %47 = arith.addf %44, %46 : vector<8x1xf32>
    %cst_29 = arith.constant 0.000000e+00 : f32
    %48 = vector.broadcast %cst_29 : f32 to vector<8x1xf32>
    %49 = arith.subf %48, %47 : vector<8x1xf32>
    %50 = math.exp %49 : vector<8x1xf32>
    %cst_30 = arith.constant 1.000000e+00 : f32
    %51 = vector.broadcast %cst_30 : f32 to vector<8x1xf32>
    %52 = arith.addf %51, %50 : vector<8x1xf32>
    %53 = tpu.reciprocal %52 {approx = true} : vector<8x1xf32> -> vector<8x1xf32>
    %c0_31 = arith.constant 0 : index
    %c0_32 = arith.constant 0 : index
    %54 = vector.load %arg12[%c0_31, %c0_32] : memref<8x1xf32, #tpu.memory_space<vmem>>, vector<8x1xf32>
    tpu.vector_store %arg12[%c0_31, %c0_32], %53 {strides = array<i32>} : memref<8x1xf32, #tpu.memory_space<vmem>>, vector<8x1xf32>,
    return
  }
  func.func @transform_0(%arg0: i32) -> (i32, i32) {
    %c0_i32 = arith.constant 0 : i32
    %c0_i32_0 = arith.constant 0 : i32
    return %arg0, %c0_i32 : i32, i32
  }
  func.func @transform_1(%arg0: i32) -> (i32, i32) {
    %c0_i32 = arith.constant 0 : i32
    %c0_i32_0 = arith.constant 0 : i32
    %c0_i32_1 = arith.constant 0 : i32
    return %c0_i32, %c0_i32_0 : i32, i32
  }
  func.func @transform_2(%arg0: i32) -> (i32, i32) {
    %c0_i32 = arith.constant 0 : i32
    %c0_i32_0 = arith.constant 0 : i32
    %c0_i32_1 = arith.constant 0 : i32
    return %c0_i32, %c0_i32_0 : i32, i32
  }
  func.func @transform_3(%arg0: i32) -> (i32, i32) {
    %c0_i32 = arith.constant 0 : i32
    %c0_i32_0 = arith.constant 0 : i32
    %c0_i32_1 = arith.constant 0 : i32
    return %c0_i32, %c0_i32_0 : i32, i32
  }
  func.func @transform_4(%arg0: i32) -> (i32, i32) {
    %c0_i32 = arith.constant 0 : i32
    %c0_i32_0 = arith.constant 0 : i32
    %c0_i32_1 = arith.constant 0 : i32
    return %c0_i32, %c0_i32_0 : i32, i32
  }
  func.func @transform_5(%arg0: i32) -> (i32, i32) {
    %c0_i32 = arith.constant 0 : i32
    %c0_i32_0 = arith.constant 0 : i32
    %c0_i32_1 = arith.constant 0 : i32
    return %c0_i32, %c0_i32_0 : i32, i32
  }
  func.func @transform_6(%arg0: i32) -> (i32, i32) {
    %c0_i32 = arith.constant 0 : i32
    %c0_i32_0 = arith.constant 0 : i32
    %c0_i32_1 = arith.constant 0 : i32
    return %c0_i32, %c0_i32_0 : i32, i32
  }
  func.func @transform_7(%arg0: i32) -> (i32, i32) {
    %c0_i32 = arith.constant 0 : i32
    %c0_i32_0 = arith.constant 0 : i32
    %c0_i32_1 = arith.constant 0 : i32
    return %c0_i32, %c0_i32_0 : i32, i32
  }
  func.func @transform_8(%arg0: i32) -> (i32, i32) {
    %c0_i32 = arith.constant 0 : i32
    %c0_i32_0 = arith.constant 0 : i32
    %c0_i32_1 = arith.constant 0 : i32
    return %c0_i32, %c0_i32_0 : i32, i32
  }
  func.func @transform_9(%arg0: i32) -> (i32, i32) {
    %c0_i32 = arith.constant 0 : i32
    %c0_i32_0 = arith.constant 0 : i32
    %c0_i32_1 = arith.constant 0 : i32
    return %c0_i32, %c0_i32_0 : i32, i32
  }
  func.func @transform_10(%arg0: i32) -> i32 {
    %c0_i32 = arith.constant 0 : i32
    %c0_i32_0 = arith.constant 0 : i32
    return %c0_i32 : i32
  }
  func.func @transform_11(%arg0: i32) -> (i32, i32) {
    %c0_i32 = arith.constant 0 : i32
    %c0_i32_0 = arith.constant 0 : i32
    return %arg0, %c0_i32 : i32, i32
  }
}

</mosaic_0001>

<llo_original>
// kernel: tpu_custom_call.1
$region0: #{tpu_custom_call.1}
  #allocation0 [shape = 'u32[]', space=smem, size = 0x4, offset = 0x4, fixed_abs, tag = 'smem constant byte address 0x4 - core index']
  #allocation1 [shape = 'u32[144,128]{1,0:T(1,128)}', space=vmem, size = 0x12000, scoped, tag = 'internal scratch']
  %s0 = inlined_call_operand.hbm [shape: bf16[8,128], index: 0, kind: input, shape index: {}]
  %s1 = inlined_call_operand.hbm [shape: bf16[128,128], index: 1, kind: input, shape index: {}]
  %s2 = inlined_call_operand.vmem [shape: f32[1,128], index: 2, kind: input, shape index: {}]
  %s3 = inlined_call_operand.hbm [shape: bf16[128,128], index: 3, kind: input, shape index: {}]
  %s4 = inlined_call_operand.vmem [shape: f32[1,128], index: 4, kind: input, shape index: {}]
  %s5 = inlined_call_operand.hbm [shape: bf16[128,128], index: 5, kind: input, shape index: {}]
  %s6 = inlined_call_operand.vmem [shape: f32[1,128], index: 6, kind: input, shape index: {}]
  %s7 = inlined_call_operand.hbm [shape: bf16[128,128], index: 7, kind: input, shape index: {}]
  %s8 = inlined_call_operand.vmem [shape: f32[1,128], index: 8, kind: input, shape index: {}]
  %s9 = inlined_call_operand.vmem [shape: f32[1,128], index: 9, kind: input, shape index: {}]
  %s10 = inlined_call_operand.vmem [shape: f32[3], index: 10, kind: input, shape index: {}]
  %s11 = inlined_call_operand.vmem [shape: f32[8,1], index: 11, kind: output, shape index: {}]
  %s12 = sld [smem:[#allocation0]]
  $region78: #{tpu_custom_call.1} parent=0
    _
  %s14 = ssub.s32 1, %s12
  %s15 = scalar_select 0, %s14, %s12
  $region1: #{tpu_custom_call.1} parent=0
    #allocation2 [shape = 'u8[2048]{0}', space=vmem, size = 0x800, scoped, tag = 'input window, operand 0, single buffered']
    #allocation3 [shape = 's32[1]{0}', space=sflag, size = 0x4, scoped, tag = 'scoped memory for tpu_custom_call.1']
    #allocation4 [shape = 's32[1]{0}', space=sflag, size = 0x4, scoped, tag = 'scoped memory for tpu_custom_call.1']
    #allocation5 [shape = 'u8[32768]{0}', space=vmem, size = 0x8000, scoped, tag = 'input window, operand 1, single buffered']
    #allocation6 [shape = 's32[1]{0}', space=sflag, size = 0x4, scoped, tag = 'scoped memory for tpu_custom_call.1']
    #allocation7 [shape = 'u8[32768]{0}', space=vmem, size = 0x8000, scoped, tag = 'input window, operand 3, single buffered']
    #allocation8 [shape = 'u8[32768]{0}', space=vmem, size = 0x8000, scoped, tag = 'input window, operand 5, single buffered']
    #allocation9 [shape = 's32[1]{0}', space=sflag, size = 0x4, scoped, tag = 'scoped memory for tpu_custom_call.1']
    #allocation10 [shape = 'u8[32768]{0}', space=vmem, size = 0x8000, scoped, tag = 'input window, operand 7, single buffered']
    #allocation11 [shape = 'u8[512]{0}', space=smem, size = 0x200, scoped, tag = 'input window, operand 10, single buffered']
    %16 = vsyncpa [#allocation3], 0
    %17 = vsyncpa [#allocation6], 0
    %18 = vsyncpa [#allocation9], 0
    %19 = vsyncpa [#allocation4], 0
    // Predicated region
    $region2: #{tpu_custom_call.1} parent=1 // pred_check
      _
    $region3: #{tpu_custom_call.1} parent=1 // pred_check_branch
      %21 = sbr.rel (0) target = $region5
    $region4: #{tpu_custom_call.1} parent=1 // pred_region
      %s23 = ssub.s32 64, 64
      %24 = vsyncadd [#allocation3], %s23
      %s26 = sshll.u32 [#allocation2], 4
      %s27 = int_to_ptr.vmem [resolvable:$true] %s26
      %29 = dma.hbm_to_vmem [thread:$0]  %s0, 64, %s27, [#allocation3]
    $region5: #{tpu_custom_call.1} parent=1 // pred_fallthru
      _
    // Predicated region
    $region6: #{tpu_custom_call.1} parent=1 // pred_check
      _
    $region7: #{tpu_custom_call.1} parent=1 // pred_check_branch
      %31 = sbr.rel (0) target = $region9
    $region8: #{tpu_custom_call.1} parent=1 // pred_region
      %s33 = ssub.s32 1024, 1024
      %34 = vsyncadd [#allocation6], %s33
      %s35 = sshll.u32 [#allocation5], 4
      %s36 = int_to_ptr.vmem [resolvable:$true] %s35
      %41 = dma.hbm_to_vmem [thread:$0]  %s1, 1024, %s36, [#allocation6], 64, 64, 4
    $region9: #{tpu_custom_call.1} parent=1 // pred_fallthru
      _
    // Predicated region
    $region10: #{tpu_custom_call.1} parent=1 // pred_check
      _
    $region11: #{tpu_custom_call.1} parent=1 // pred_check_branch
      %43 = sbr.rel (0) target = $region13
    $region12: #{tpu_custom_call.1} parent=1 // pred_region
      _
    $region13: #{tpu_custom_call.1} parent=1 // pred_fallthru
      _
    // Predicated region
    $region14: #{tpu_custom_call.1} parent=1 // pred_check
      _
    $region15: #{tpu_custom_call.1} parent=1 // pred_check_branch
      %45 = sbr.rel (0) target = $region17
    $region16: #{tpu_custom_call.1} parent=1 // pred_region
      %s47 = ssub.s32 1024, 1024
      %48 = vsyncadd [#allocation6], %s47
      %s49 = sshll.u32 [#allocation7], 4
      %s50 = int_to_ptr.vmem [resolvable:$true] %s49
      %55 = dma.hbm_to_vmem [thread:$0]  %s3, 1024, %s50, [#allocation6], 64, 64, 4
    $region17: #{tpu_custom_call.1} parent=1 // pred_fallthru
      _
    // Predicated region
    $region18: #{tpu_custom_call.1} parent=1 // pred_check
      _
    $region19: #{tpu_custom_call.1} parent=1 // pred_check_branch
      %57 = sbr.rel (0) target = $region21
    $region20: #{tpu_custom_call.1} parent=1 // pred_region
      _
    $region21: #{tpu_custom_call.1} parent=1 // pred_fallthru
      _
    // Predicated region
    $region22: #{tpu_custom_call.1} parent=1 // pred_check
      _
    $region23: #{tpu_custom_call.1} parent=1 // pred_check_branch
      %59 = sbr.rel (0) target = $region25
    $region24: #{tpu_custom_call.1} parent=1 // pred_region
      %s61 = ssub.s32 1024, 1024
      %62 = vsyncadd [#allocation9], %s61
      %s63 = sshll.u32 [#allocation8], 4
      %s64 = int_to_ptr.vmem [resolvable:$true] %s63
      %69 = dma.hbm_to_vmem [thread:$0]  %s5, 1024, %s64, [#allocation9], 64, 64, 4
    $region25: #{tpu_custom_call.1} parent=1 // pred_fallthru
      _
    // Predicated region
    $region26: #{tpu_custom_call.1} parent=1 // pred_check
      _
    $region27: #{tpu_custom_call.1} parent=1 // pred_check_branch
      %71 = sbr.rel (0) target = $region29
    $region28: #{tpu_custom_call.1} parent=1 // pred_region
      _
    $region29: #{tpu_custom_call.1} parent=1 // pred_fallthru
      _
    // Predicated region
    $region30: #{tpu_custom_call.1} parent=1 // pred_check
      _
    $region31: #{tpu_custom_call.1} parent=1 // pred_check_branch
      %73 = sbr.rel (0) target = $region33
    $region32: #{tpu_custom_call.1} parent=1 // pred_region
      %s75 = ssub.s32 1024, 1024
      %76 = vsyncadd [#allocation9], %s75
      %s77 = sshll.u32 [#allocation10], 4
      %s78 = int_to_ptr.vmem [resolvable:$true] %s77
      %83 = dma.hbm_to_vmem [thread:$0]  %s7, 1024, %s78, [#allocation9], 64, 64, 4
    $region33: #{tpu_custom_call.1} parent=1 // pred_fallthru
      _
    // Predicated region
    $region34: #{tpu_custom_call.1} parent=1 // pred_check
      _
    $region35: #{tpu_custom_call.1} parent=1 // pred_check_branch
      %85 = sbr.rel (0) target = $region37
    $region36: #{tpu_custom_call.1} parent=1 // pred_region
      _
    $region37: #{tpu_custom_call.1} parent=1 // pred_fallthru
      _
    // Predicated region
    $region38: #{tpu_custom_call.1} parent=1 // pred_check
      _
    $region39: #{tpu_custom_call.1} parent=1 // pred_check_branch
      %87 = sbr.rel (0) target = $region41
    $region40: #{tpu_custom_call.1} parent=1 // pred_region
      _
    $region41: #{tpu_custom_call.1} parent=1 // pred_fallthru
      _
    // Predicated region
    $region42: #{tpu_custom_call.1} parent=1 // pred_check
      _
    $region43: #{tpu_custom_call.1} parent=1 // pred_check_branch
      %89 = sbr.rel (0) target = $region45
    $region44: #{tpu_custom_call.1} parent=1 // pred_region
      %s91 = ssub.s32 16, 16
      %92 = vsyncadd [#allocation4], %s91
      %s94 = sshll.u32 %s10, 4
      %s95 = int_to_ptr.vmem [resolvable:$true] %s94
      %97 = dma.vmem_to_smem %s95, 16, [#allocation11], [#allocation4]
    $region45: #{tpu_custom_call.1} parent=1 // pred_fallthru
      _
    // Predicated region
    $region46: #{tpu_custom_call.1} parent=1 // pred_check
      _
    $region47: #{tpu_custom_call.1} parent=1 // pred_check_branch
      %99 = sbr.rel (0) target = $region49
    $region48: #{tpu_custom_call.1} parent=1 // pred_region
      %100 = dma.done [#allocation3], 64
    $region49: #{tpu_custom_call.1} parent=1 // pred_fallthru
      _
    // Predicated region
    $region50: #{tpu_custom_call.1} parent=1 // pred_check
      _
    $region51: #{tpu_custom_call.1} parent=1 // pred_check_branch
      %102 = sbr.rel (0) target = $region53
    $region52: #{tpu_custom_call.1} parent=1 // pred_region
      %103 = dma.done [#allocation6], 1024
    $region53: #{tpu_custom_call.1} parent=1 // pred_fallthru
      _
    // Predicated region
    $region54: #{tpu_custom_call.1} parent=1 // pred_check
      _
    $region55: #{tpu_custom_call.1} parent=1 // pred_check_branch
      %105 = sbr.rel (0) target = $region57
    $region56: #{tpu_custom_call.1} parent=1 // pred_region
      %106 = dma.done [#allocation6], 1024
    $region57: #{tpu_custom_call.1} parent=1 // pred_fallthru
      _
    // Predicated region
    $region58: #{tpu_custom_call.1} parent=1 // pred_check
      _
    $region59: #{tpu_custom_call.1} parent=1 // pred_check_branch
      %108 = sbr.rel (0) target = $region61
    $region60: #{tpu_custom_call.1} parent=1 // pred_region
      %109 = dma.done [#allocation9], 1024
    $region61: #{tpu_custom_call.1} parent=1 // pred_fallthru
      _
    // Predicated region
    $region62: #{tpu_custom_call.1} parent=1 // pred_check
      _
    $region63: #{tpu_custom_call.1} parent=1 // pred_check_branch
      %111 = sbr.rel (0) target = $region65
    $region64: #{tpu_custom_call.1} parent=1 // pred_region
      %112 = dma.done [#allocation9], 1024
    $region65: #{tpu_custom_call.1} parent=1 // pred_fallthru
      _
    // Predicated region
    $region66: #{tpu_custom_call.1} parent=1 // pred_check
      _
    $region67: #{tpu_custom_call.1} parent=1 // pred_check_branch
      %114 = sbr.rel (0) target = $region69
    $region68: #{tpu_custom_call.1} parent=1 // pred_region
      %115 = dma.done [#allocation4], 16
    $region69: #{tpu_custom_call.1} parent=1 // pred_fallthru
      _
    %116 = sfence
    %v118 = vld [vmem:[#allocation2] sm:$0xf]
    %v119 = vld [vmem:[#allocation5] sm:$0xf]
    %v120 = vld [vmem:[#allocation5 + $0x4] sm:$0xf]
    %v121 = vld [vmem:[#allocation5 + $0x8] sm:$0xf]
    %v122 = vld [vmem:[#allocation5 + $0xc] sm:$0xf]
    %v123 = vld [vmem:[#allocation5 + $0x10] sm:$0xf]
    %v124 = vld [vmem:[#allocation5 + $0x14] sm:$0xf]
    %v125 = vld [vmem:[#allocation5 + $0x18] sm:$0xf]
    %v126 = vld [vmem:[#allocation5 + $0x1c] sm:$0xf]
    %v127 = vld [vmem:[#allocation5 + $0x20] sm:$0xf]
    %v128 = vld [vmem:[#allocation5 + $0x24] sm:$0xf]
    %v129 = vld [vmem:[#allocation5 + $0x28] sm:$0xf]
    %v130 = vld [vmem:[#allocation5 + $0x2c] sm:$0xf]
    %v131 = vld [vmem:[#allocation5 + $0x30] sm:$0xf]
    %v132 = vld [vmem:[#allocation5 + $0x34] sm:$0xf]
    %v133 = vld [vmem:[#allocation5 + $0x38] sm:$0xf]
    %v134 = vld [vmem:[#allocation5 + $0x3c] sm:$0xf]
    %v135 = vld [vmem:[%s2] sm:$0x1]
    %v137 = vlaneseq
    %v138 = vshrl.u32 %v137, 7
    %v139 = vsub.s32 0, %v138
    %v140 = vrot.slane %v135, %v139
    %v158 = vunpack.c.l.b16 %v119
    %v159 = vunpack.c.l.b16 %v120
    %v160 = vunpack.c.l.b16 %v121
    %v161 = vunpack.c.l.b16 %v122
    %v162 = vunpack.c.l.b16 %v123
    %v163 = vunpack.c.l.b16 %v124
    %v164 = vunpack.c.l.b16 %v125
    %v165 = vunpack.c.l.b16 %v126
    %v166 = vunpack.c.l.b16 %v127
    %v167 = vunpack.c.l.b16 %v128
    %v168 = vunpack.c.l.b16 %v129
    %v169 = vunpack.c.l.b16 %v130
    %v170 = vunpack.c.l.b16 %v131
    %v171 = vunpack.c.l.b16 %v132
    %v172 = vunpack.c.l.b16 %v133
    %v173 = vunpack.c.l.b16 %v134
    %v174 = vpack.c.b16 %v159, %v158
    %v175 = vpack.c.b16 %v161, %v160
    %v176 = vpack.c.b16 %v163, %v162
    %v177 = vpack.c.b16 %v165, %v164
    %v178 = vpack.c.b16 %v167, %v166
    %v179 = vpack.c.b16 %v169, %v168
    %v180 = vpack.c.b16 %v171, %v170
    %v181 = vpack.c.b16 %v173, %v172
    %190 = vmatprep.subr.bf16.mxu0 0
    %191 = vmatpush1.bf16.msra.mxu0 %v174
    %192 = vmatprep.subr.bf16.mxu0 0
    %193 = vmatpush1.bf16.msra.mxu0 %v175
    %194 = vmatprep.subr.bf16.mxu0 0
    %195 = vmatpush1.bf16.msra.mxu0 %v176
    %196 = vmatprep.subr.bf16.mxu0 0
    %197 = vmatpush1.bf16.msra.mxu0 %v177
    %198 = vmatprep.subr.bf16.mxu0 0
    %199 = vmatpush1.bf16.msra.mxu0 %v178
    %200 = vmatprep.subr.bf16.mxu0 0
    %201 = vmatpush1.bf16.msra.mxu0 %v179
    %202 = vmatprep.subr.bf16.mxu0 0
    %203 = vmatpush1.bf16.msra.mxu0 %v180
    %204 = vmatprep.subr.bf16.mxu0 0
    %205 = vmatpush1.bf16.msra.mxu0 %v181
    %206 = vmatprep.subr.bf16.mxu0 0
    %207 = vmatpush1.bf16.msra.mxu0 0
    %208 = vmatprep.subr.bf16.mxu0 0
    %209 = vmatpush1.bf16.msra.mxu0 0
    %210 = vmatprep.subr.bf16.mxu0 0
    %211 = vmatpush1.bf16.msra.mxu0 0
    %212 = vmatprep.subr.bf16.mxu0 0
    %213 = vmatpush1.bf16.msra.mxu0 0
    %214 = vmatprep.subr.bf16.mxu0 0
    %215 = vmatpush1.bf16.msra.mxu0 0
    %216 = vmatprep.subr.bf16.mxu0 0
    %217 = vmatpush1.bf16.msra.mxu0 0
    %218 = vmatprep.subr.bf16.mxu0 0
    %219 = vmatpush1.bf16.msra.mxu0 0
    %220 = vmatprep.subr.bf16.mxu0 0
    %221 = vmatpush1.bf16.msra.mxu0 0
    %222 = vmatprep.mubr.bf16.mxu0 0
    %223 = vmatmul.mubr.bf16.gmra.mrb[0].mxu0 %v118
    %v224 = vpop.f32.mrb[0].mxu0
    %v225 = vadd.f32 %v140, %v224
    %v226 = vpop.f32.mrb[0].mxu0
    %v227 = vpop.f32.mrb[0].mxu0
    %v228 = vpop.f32.mrb[0].mxu0
    %229 = vdwg.mxu0
    %v230 = vmax.f32 %v225, 0.0
    %v231 = vpack.c.bf16 %v230, %v230
    %v232 = vld [vmem:[#allocation7] sm:$0xf]
    %v233 = vld [vmem:[#allocation7 + $0x4] sm:$0xf]
    %v234 = vld [vmem:[#allocation7 + $0x8] sm:$0xf]
    %v235 = vld [vmem:[#allocation7 + $0xc] sm:$0xf]
    %v236 = vld [vmem:[#allocation7 + $0x10] sm:$0xf]
    %v237 = vld [vmem:[#allocation7 + $0x14] sm:$0xf]
    %v238 = vld [vmem:[#allocation7 + $0x18] sm:$0xf]
    %v239 = vld [vmem:[#allocation7 + $0x1c] sm:$0xf]
    %v240 = vld [vmem:[#allocation7 + $0x20] sm:$0xf]
    %v241 = vld [vmem:[#allocation7 + $0x24] sm:$0xf]
    %v242 = vld [vmem:[#allocation7 + $0x28] sm:$0xf]
    %v243 = vld [vmem:[#allocation7 + $0x2c] sm:$0xf]
    %v244 = vld [vmem:[#allocation7 + $0x30] sm:$0xf]
    %v245 = vld [vmem:[#allocation7 + $0x34] sm:$0xf]
    %v246 = vld [vmem:[#allocation7 + $0x38] sm:$0xf]
    %v247 = vld [vmem:[#allocation7 + $0x3c] sm:$0xf]
    %v248 = vld [vmem:[%s4] sm:$0x1]
    %v250 = vlaneseq
    %v251 = vshrl.u32 %v250, 7
    %v252 = vsub.s32 0, %v251
    %v253 = vrot.slane %v248, %v252
    %v271 = vunpack.c.l.b16 %v232
    %v272 = vunpack.c.l.b16 %v233
    %v273 = vunpack.c.l.b16 %v234
    %v274 = vunpack.c.l.b16 %v235
    %v275 = vunpack.c.l.b16 %v236
    %v276 = vunpack.c.l.b16 %v237
    %v277 = vunpack.c.l.b16 %v238
    %v278 = vunpack.c.l.b16 %v239
    %v279 = vunpack.c.l.b16 %v240
    %v280 = vunpack.c.l.b16 %v241
    %v281 = vunpack.c.l.b16 %v242
    %v282 = vunpack.c.l.b16 %v243
    %v283 = vunpack.c.l.b16 %v244
    %v284 = vunpack.c.l.b16 %v245
    %v285 = vunpack.c.l.b16 %v246
    %v286 = vunpack.c.l.b16 %v247
    %v287 = vpack.c.b16 %v272, %v271
    %v288 = vpack.c.b16 %v274, %v273
    %v289 = vpack.c.b16 %v276, %v275
    %v290 = vpack.c.b16 %v278, %v277
    %v291 = vpack.c.b16 %v280, %v279
    %v292 = vpack.c.b16 %v282, %v281
    %v293 = vpack.c.b16 %v284, %v283
    %v294 = vpack.c.b16 %v286, %v285
    %303 = vmatprep.subr.bf16.mxu0 0
    %304 = vmatpush1.bf16.msra.mxu0 %v287
    %305 = vmatprep.subr.bf16.mxu0 0
    %306 = vmatpush1.bf16.msra.mxu0 %v288
    %307 = vmatprep.subr.bf16.mxu0 0
    %308 = vmatpush1.bf16.msra.mxu0 %v289
    %309 = vmatprep.subr.bf16.mxu0 0
    %310 = vmatpush1.bf16.msra.mxu0 %v290
    %311 = vmatprep.subr.bf16.mxu0 0
    %312 = vmatpush1.bf16.msra.mxu0 %v291
    %313 = vmatprep.subr.bf16.mxu0 0
    %314 = vmatpush1.bf16.msra.mxu0 %v292
    %315 = vmatprep.subr.bf16.mxu0 0
    %316 = vmatpush1.bf16.msra.mxu0 %v293
    %317 = vmatprep.subr.bf16.mxu0 0
    %318 = vmatpush1.bf16.msra.mxu0 %v294
    %319 = vmatprep.subr.bf16.mxu0 0
    %320 = vmatpush1.bf16.msra.mxu0 0
    %321 = vmatprep.subr.bf16.mxu0 0
    %322 = vmatpush1.bf16.msra.mxu0 0
    %323 = vmatprep.subr.bf16.mxu0 0
    %324 = vmatpush1.bf16.msra.mxu0 0
    %325 = vmatprep.subr.bf16.mxu0 0
    %326 = vmatpush1.bf16.msra.mxu0 0
    %327 = vmatprep.subr.bf16.mxu0 0
    %328 = vmatpush1.bf16.msra.mxu0 0
    %329 = vmatprep.subr.bf16.mxu0 0
    %330 = vmatpush1.bf16.msra.mxu0 0
    %331 = vmatprep.subr.bf16.mxu0 0
    %332 = vmatpush1.bf16.msra.mxu0 0
    %333 = vmatprep.subr.bf16.mxu0 0
    %334 = vmatpush1.bf16.msra.mxu0 0
    %335 = vmatprep.mubr.bf16.mxu0 0
    %336 = vmatmul.mubr.bf16.gmra.mrb[0].mxu0 %v231
    %v337 = vpop.f32.mrb[0].mxu0
    %v338 = vadd.f32 %v253, %v337
    %v339 = vpop.f32.mrb[0].mxu0
    %v340 = vpop.f32.mrb[0].mxu0
    %v341 = vpop.f32.mrb[0].mxu0
    %342 = vdwg.mxu0
    %v343 = vmax.f32 %v338, 0.0
    %v344 = vpack.c.bf16 %v343, %v343
    %v345 = vld [vmem:[#allocation8] sm:$0xf]
    %v346 = vld [vmem:[#allocation8 + $0x4] sm:$0xf]
    %v347 = vld [vmem:[#allocation8 + $0x8] sm:$0xf]
    %v348 = vld [vmem:[#allocation8 + $0xc] sm:$0xf]
    %v349 = vld [vmem:[#allocation8 + $0x10] sm:$0xf]
    %v350 = vld [vmem:[#allocation8 + $0x14] sm:$0xf]
    %v351 = vld [vmem:[#allocation8 + $0x18] sm:$0xf]
    %v352 = vld [vmem:[#allocation8 + $0x1c] sm:$0xf]
    %v353 = vld [vmem:[#allocation8 + $0x20] sm:$0xf]
    %v354 = vld [vmem:[#allocation8 + $0x24] sm:$0xf]
    %v355 = vld [vmem:[#allocation8 + $0x28] sm:$0xf]
    %v356 = vld [vmem:[#allocation8 + $0x2c] sm:$0xf]
    %v357 = vld [vmem:[#allocation8 + $0x30] sm:$0xf]
    %v358 = vld [vmem:[#allocation8 + $0x34] sm:$0xf]
    %v359 = vld [vmem:[#allocation8 + $0x38] sm:$0xf]
    %v360 = vld [vmem:[#allocation8 + $0x3c] sm:$0xf]
    %v361 = vld [vmem:[%s6] sm:$0x1]
    %v363 = vlaneseq
    %v364 = vshrl.u32 %v363, 7
    %v365 = vsub.s32 0, %v364
    %v366 = vrot.slane %v361, %v365
    %v384 = vunpack.c.l.b16 %v345
    %v385 = vunpack.c.l.b16 %v346
    %v386 = vunpack.c.l.b16 %v347
    %v387 = vunpack.c.l.b16 %v348
    %v388 = vunpack.c.l.b16 %v349
    %v389 = vunpack.c.l.b16 %v350
    %v390 = vunpack.c.l.b16 %v351
    %v391 = vunpack.c.l.b16 %v352
    %v392 = vunpack.c.l.b16 %v353
    %v393 = vunpack.c.l.b16 %v354
    %v394 = vunpack.c.l.b16 %v355
    %v395 = vunpack.c.l.b16 %v356
    %v396 = vunpack.c.l.b16 %v357
    %v397 = vunpack.c.l.b16 %v358
    %v398 = vunpack.c.l.b16 %v359
    %v399 = vunpack.c.l.b16 %v360
    %v400 = vpack.c.b16 %v385, %v384
    %v401 = vpack.c.b16 %v387, %v386
    %v402 = vpack.c.b16 %v389, %v388
    %v403 = vpack.c.b16 %v391, %v390
    %v404 = vpack.c.b16 %v393, %v392
    %v405 = vpack.c.b16 %v395, %v394
    %v406 = vpack.c.b16 %v397, %v396
    %v407 = vpack.c.b16 %v399, %v398
    %416 = vmatprep.subr.bf16.mxu0 0
    %417 = vmatpush1.bf16.msra.mxu0 %v400
    %418 = vmatprep.subr.bf16.mxu0 0
    %419 = vmatpush1.bf16.msra.mxu0 %v401
    %420 = vmatprep.subr.bf16.mxu0 0
    %421 = vmatpush1.bf16.msra.mxu0 %v402
    %422 = vmatprep.subr.bf16.mxu0 0
    %423 = vmatpush1.bf16.msra.mxu0 %v403
    %424 = vmatprep.subr.bf16.mxu0 0
    %425 = vmatpush1.bf16.msra.mxu0 %v404
    %426 = vmatprep.subr.bf16.mxu0 0
    %427 = vmatpush1.bf16.msra.mxu0 %v405
    %428 = vmatprep.subr.bf16.mxu0 0
    %429 = vmatpush1.bf16.msra.mxu0 %v406
    %430 = vmatprep.subr.bf16.mxu0 0
    %431 = vmatpush1.bf16.msra.mxu0 %v407
    %432 = vmatprep.subr.bf16.mxu0 0
    %433 = vmatpush1.bf16.msra.mxu0 0
    %434 = vmatprep.subr.bf16.mxu0 0
    %435 = vmatpush1.bf16.msra.mxu0 0
    %436 = vmatprep.subr.bf16.mxu0 0
    %437 = vmatpush1.bf16.msra.mxu0 0
    %438 = vmatprep.subr.bf16.mxu0 0
    %439 = vmatpush1.bf16.msra.mxu0 0
    %440 = vmatprep.subr.bf16.mxu0 0
    %441 = vmatpush1.bf16.msra.mxu0 0
    %442 = vmatprep.subr.bf16.mxu0 0
    %443 = vmatpush1.bf16.msra.mxu0 0
    %444 = vmatprep.subr.bf16.mxu0 0
    %445 = vmatpush1.bf16.msra.mxu0 0
    %446 = vmatprep.subr.bf16.mxu0 0
    %447 = vmatpush1.bf16.msra.mxu0 0
    %448 = vmatprep.mubr.bf16.mxu0 0
    %449 = vmatmul.mubr.bf16.gmra.mrb[0].mxu0 %v344
    %v450 = vpop.f32.mrb[0].mxu0
    %v451 = vadd.f32 %v366, %v450
    %v452 = vpop.f32.mrb[0].mxu0
    %v453 = vpop.f32.mrb[0].mxu0
    %v454 = vpop.f32.mrb[0].mxu0
    %455 = vdwg.mxu0
    %v456 = vmax.f32 %v451, 0.0
    %v457 = vpack.c.bf16 %v456, %v456
    %v458 = vld [vmem:[#allocation10] sm:$0xf]
    %v459 = vld [vmem:[#allocation10 + $0x4] sm:$0xf]
    %v460 = vld [vmem:[#allocation10 + $0x8] sm:$0xf]
    %v461 = vld [vmem:[#allocation10 + $0xc] sm:$0xf]
    %v462 = vld [vmem:[#allocation10 + $0x10] sm:$0xf]
    %v463 = vld [vmem:[#allocation10 + $0x14] sm:$0xf]
    %v464 = vld [vmem:[#allocation10 + $0x18] sm:$0xf]
    %v465 = vld [vmem:[#allocation10 + $0x1c] sm:$0xf]
    %v466 = vld [vmem:[#allocation10 + $0x20] sm:$0xf]
    %v467 = vld [vmem:[#allocation10 + $0x24] sm:$0xf]
    %v468 = vld [vmem:[#allocation10 + $0x28] sm:$0xf]
    %v469 = vld [vmem:[#allocation10 + $0x2c] sm:$0xf]
    %v470 = vld [vmem:[#allocation10 + $0x30] sm:$0xf]
    %v471 = vld [vmem:[#allocation10 + $0x34] sm:$0xf]
    %v472 = vld [vmem:[#allocation10 + $0x38] sm:$0xf]
    %v473 = vld [vmem:[#allocation10 + $0x3c] sm:$0xf]
    %v474 = vld [vmem:[%s8] sm:$0x1]
    %v476 = vlaneseq
    %v477 = vshrl.u32 %v476, 7
    %v478 = vsub.s32 0, %v477
    %v479 = vrot.slane %v474, %v478
    %v497 = vunpack.c.l.b16 %v458
    %v498 = vunpack.c.l.b16 %v459
    %v499 = vunpack.c.l.b16 %v460
    %v500 = vunpack.c.l.b16 %v461
    %v501 = vunpack.c.l.b16 %v462
    %v502 = vunpack.c.l.b16 %v463
    %v503 = vunpack.c.l.b16 %v464
    %v504 = vunpack.c.l.b16 %v465
    %v505 = vunpack.c.l.b16 %v466
    %v506 = vunpack.c.l.b16 %v467
    %v507 = vunpack.c.l.b16 %v468
    %v508 = vunpack.c.l.b16 %v469
    %v509 = vunpack.c.l.b16 %v470
    %v510 = vunpack.c.l.b16 %v471
    %v511 = vunpack.c.l.b16 %v472
    %v512 = vunpack.c.l.b16 %v473
    %v513 = vpack.c.b16 %v498, %v497
    %v514 = vpack.c.b16 %v500, %v499
    %v515 = vpack.c.b16 %v502, %v501
    %v516 = vpack.c.b16 %v504, %v503
    %v517 = vpack.c.b16 %v506, %v505
    %v518 = vpack.c.b16 %v508, %v507
    %v519 = vpack.c.b16 %v510, %v509
    %v520 = vpack.c.b16 %v512, %v511
    %529 = vmatprep.subr.bf16.mxu0 0
    %530 = vmatpush1.bf16.msra.mxu0 %v513
    %531 = vmatprep.subr.bf16.mxu0 0
    %532 = vmatpush1.bf16.msra.mxu0 %v514
    %533 = vmatprep.subr.bf16.mxu0 0
    %534 = vmatpush1.bf16.msra.mxu0 %v515
    %535 = vmatprep.subr.bf16.mxu0 0
    %536 = vmatpush1.bf16.msra.mxu0 %v516
    %537 = vmatprep.subr.bf16.mxu0 0
    %538 = vmatpush1.bf16.msra.mxu0 %v517
    %539 = vmatprep.subr.bf16.mxu0 0
    %540 = vmatpush1.bf16.msra.mxu0 %v518
    %541 = vmatprep.subr.bf16.mxu0 0
    %542 = vmatpush1.bf16.msra.mxu0 %v519
    %543 = vmatprep.subr.bf16.mxu0 0
    %544 = vmatpush1.bf16.msra.mxu0 %v520
    %545 = vmatprep.subr.bf16.mxu0 0
    %546 = vmatpush1.bf16.msra.mxu0 0
    %547 = vmatprep.subr.bf16.mxu0 0
    %548 = vmatpush1.bf16.msra.mxu0 0
    %549 = vmatprep.subr.bf16.mxu0 0
    %550 = vmatpush1.bf16.msra.mxu0 0
    %551 = vmatprep.subr.bf16.mxu0 0
    %552 = vmatpush1.bf16.msra.mxu0 0
    %553 = vmatprep.subr.bf16.mxu0 0
    %554 = vmatpush1.bf16.msra.mxu0 0
    %555 = vmatprep.subr.bf16.mxu0 0
    %556 = vmatpush1.bf16.msra.mxu0 0
    %557 = vmatprep.subr.bf16.mxu0 0
    %558 = vmatpush1.bf16.msra.mxu0 0
    %559 = vmatprep.subr.bf16.mxu0 0
    %560 = vmatpush1.bf16.msra.mxu0 0
    %561 = vmatprep.mubr.bf16.mxu0 0
    %562 = vmatmul.mubr.bf16.gmra.mrb[0].mxu0 %v457
    %v563 = vpop.f32.mrb[0].mxu0
    %v564 = vadd.f32 %v479, %v563
    %v565 = vpop.f32.mrb[0].mxu0
    %v566 = vpop.f32.mrb[0].mxu0
    %v567 = vpop.f32.mrb[0].mxu0
    %568 = vdwg.mxu0
    %v569 = vmax.f32 %v564, 0.0
    %v570 = vld [vmem:[%s9] sm:$0x1]
    %v572 = vlaneseq
    %v573 = vshrl.u32 %v572, 7
    %v574 = vsub.s32 0, %v573
    %v575 = vrot.slane %v570, %v574
    %v577 = vmul.f32 %v569, %v575
    %578 = vadd.xlane.f32.xlu0 %v577
    %v579 = vpop.xlane.xlu0 %578
    %s580 = sld [smem:[#allocation11]]
    %v581 = vstv %s580
    %v582 = vadd.f32 %v579, %v581
    %v583 = vmax.f32 %v582, 0.0
    %s584 = sld [smem:[#allocation11 + $0x1]]
    %v585 = vstv %s584
    %v586 = vmul.f32 %v583, %v585
    %s587 = sld [smem:[#allocation11 + $0x2]]
    %v588 = vstv %s587
    %v589 = vadd.f32 %v586, %v588
    %v590 = vsub.f32 0.0, %v589
    %v591 = vmul.f32 %v590, 1.442695
    %v592 = vpow.pop %v591
    %v593 = vadd.f32 %v592, 1.0
    %v594 = vrcp.pop %v593
    %vm595 = vcmask 7168
    %596 = vst.msk [vmem:[%s11] sm:$0xff] %vm595, %v594
    // Predicated region
    $region70: #{tpu_custom_call.1} parent=1 // pred_check
      _
    $region71: #{tpu_custom_call.1} parent=1 // pred_check_branch
      %598 = sbr.rel (0) target = $region73
    $region72: #{tpu_custom_call.1} parent=1 // pred_region
      _
    $region73: #{tpu_custom_call.1} parent=1 // pred_fallthru
      _
    // Predicated region
    $region74: #{tpu_custom_call.1} parent=1 // pred_check
      _
    $region75: #{tpu_custom_call.1} parent=1 // pred_check_branch
      %600 = sbr.rel (0) target = $region77
    $region76: #{tpu_custom_call.1} parent=1 // pred_region
      _
    $region77: #{tpu_custom_call.1} parent=1 // pred_fallthru
      _
    %601 = vsyncpa [#allocation3], 1
    %602 = vsyncpa [#allocation6], 1
    %603 = vsyncpa [#allocation9], 1
    %604 = vsyncpa [#allocation4], 1

</llo_original>
